<compile_context>
chip_gen: v7x
topology: tpu7x:2x2x1
jax: 0.10.0
libtpu: 0.0.40
codegen_flags: <defaults>
</compile_context>

<pallas_src>
import functools

import jax
import jax.numpy as jnp
import numpy as np
from jax.experimental import pallas as pl
from jax.experimental.pallas import tpu as pltpu


# ----------------------------------------------------------------------------
# Pass 1: per-metapath score accumulation + softmax -> beta  (grid over N tiles)
# ----------------------------------------------------------------------------
def _score_kernel(zf_ref, sel_ref, w1_ref, b1_ref, w2_ref, beta_ref, hsum_ref,
                  *, n_nodes, use_bf16):
    i = pl.program_id(0)

    @pl.when(i == 0)
    def _init():
        hsum_ref[...] = jnp.zeros_like(hsum_ref)

    zb = zf_ref[...]                      # (TR, D) rows = (node, metapath) pairs
    w1 = w1_ref[...]
    if use_bf16:                          # static (trace-time) flag
        zb = zb.astype(jnp.bfloat16)
        w1 = w1.astype(jnp.bfloat16)

    # projection: tanh(z @ W1 + b1), accumulated in f32
    h = jnp.tanh(
        jnp.dot(zb, w1, preferred_element_type=jnp.float32) + b1_ref[...]
    )                                     # (TR, H) f32

    # per-metapath partial sums over the nodes of this tile:
    # sel[m, r] = 1.0 iff (r % M == m), so sel @ h groups rows by metapath.
    hsum_ref[...] += jnp.dot(sel_ref[...], h,
                             preferred_element_type=jnp.float32)   # (M, H)

    @pl.when(i == pl.num_programs(0) - 1)
    def _finalize():
        h_mean = hsum_ref[...] * (1.0 / float(n_nodes))            # (M, H)
        # w = h_mean @ w2, done as VPU multiply + lane reduce (w2 stored (1, H))
        w = jnp.sum(h_mean * w2_ref[...], axis=1, keepdims=True)   # (M, 1)
        w_max = jnp.max(w)
        e = jnp.exp(w - w_max)
        beta_ref[...] = e / jnp.sum(e)                             # (M, 1)


# ----------------------------------------------------------------------------
# Pass 2: out = sum_m beta[m] * z[:, m, :]   (grid over N tiles, parallel)
# ----------------------------------------------------------------------------
def _weighted_sum_kernel(beta_ref, z_ref, out_ref, *, n_meta):
    acc = beta_ref[0] * z_ref[:, 0, :]          # beta scalars come from SMEM
    for m in range(1, n_meta):                  # unrolled, n_meta is small
        acc = acc + beta_ref[m] * z_ref[:, m, :]
    out_ref[...] = acc


# ----------------------------------------------------------------------------
# Wrapper
# ----------------------------------------------------------------------------
def semantic_attention(z, w1, b1, w2, *, node_tile=1024, use_bf16_matmul=False):
    """HAN semantic attention.

    z  : (N, M, D) f32
    w1 : (D, H)    first Linear weight (stored input-major / transposed)
    b1 : (1, H)    first Linear bias
    w2 : (H, 1)    second Linear weight, no bias (stored transposed)
    Returns (out (N, D), beta (1, M)).
    """
    N, M, D = z.shape
    H = w1.shape[1]

    # Largest node tile <= node_tile that divides N (keeps every block full).
    tn = max(1, min(node_tile, N))
    while N % tn:
        tn -= 1
    # TODO(synk): for huge N with no good divisor, pad z and mask padded rows in
    # pass 1 instead of shrinking the tile.
    num_tiles = N // tn
    tr = tn * M

    zf = z.reshape(N * M, D)              # wrapper-side flatten (free)
    w2_row = w2.reshape(1, H)
    sel = (jnp.arange(tr)[None, :] % M ==
           jnp.arange(M)[:, None]).astype(jnp.float32)       # (M, TR)

    # Safe on v5e (16 MiB default) / v6e (128 MiB phys) / v7x (64 MiB phys).
    vmem_limit = 32 * 1024 * 1024

    # ---- pass 1: beta -------------------------------------------------------
    score_cost = pl.CostEstimate(
        flops=2 * N * M * D * H + 2 * N * M * M * H,
        transcendentals=N * M * H,
        bytes_accessed=4 * (N * M * D + D * H + 2 * H + M),
    )
    beta_col = pl.pallas_call(
        functools.partial(_score_kernel, n_nodes=N, use_bf16=use_bf16_matmul),
        out_shape=jax.ShapeDtypeStruct((M, 1), jnp.float32),
        grid_spec=pltpu.PrefetchScalarGridSpec(
            num_scalar_prefetch=0,
            grid=(num_tiles,),
            in_specs=[
                pl.BlockSpec((tr, D), lambda i: (i, 0)),      # z_flat tile
                pl.BlockSpec((M, tr), lambda i: (0, 0)),      # selector (const)
                pl.BlockSpec((D, H), lambda i: (0, 0)),       # W1
                pl.BlockSpec((1, H), lambda i: (0, 0)),       # b1
                pl.BlockSpec((1, H), lambda i: (0, 0)),       # w2 (row)
            ],
            out_specs=pl.BlockSpec((M, 1), lambda i: (0, 0)),
            scratch_shapes=[pltpu.VMEM((M, H), jnp.float32)],
        ),
        compiler_params=pltpu.CompilerParams(
            dimension_semantics=("arbitrary",),   # sequential: hsum accumulates
            vmem_limit_bytes=vmem_limit,
        ),
        cost_estimate=score_cost,
    )(zf, sel, w1, b1, w2_row)

    beta_vec = beta_col.reshape(M)        # fed to pass 2 as SMEM scalars

    # ---- pass 2: weighted sum over metapaths --------------------------------
    ws_cost = pl.CostEstimate(
        flops=2 * N * M * D,
        transcendentals=0,
        bytes_accessed=4 * (N * M * D + N * D + M),
    )
    out = pl.pallas_call(
        functools.partial(_weighted_sum_kernel, n_meta=M),
        out_shape=jax.ShapeDtypeStruct((N, D), jnp.float32),
        grid=(num_tiles,),
        in_specs=[
            pl.BlockSpec(memory_space=pltpu.MemorySpace.SMEM),  # beta scalars
            pl.BlockSpec((tn, M, D), lambda i: (i, 0, 0)),      # z tile
        ],
        out_specs=pl.BlockSpec((tn, D), lambda i: (i, 0)),
        compiler_params=pltpu.CompilerParams(
            dimension_semantics=("parallel",),    # independent N tiles (2 TCs on v7x)
            vmem_limit_bytes=vmem_limit,
        ),
        cost_estimate=ws_cost,
    )(beta_vec, z)

    return out, beta_col.reshape(1, M)


# ----------------------------------------------------------------------------
# float64 host reference
# ----------------------------------------------------------------------------
def semantic_attention_ref_np(z, w1, b1, w2):
    z64 = np.asarray(z, np.float64)
    w1_ = np.asarray(w1, np.float64)
    b1_ = np.asarray(b1, np.float64)
    w2_ = np.asarray(w2, np.float64)
    h = np.tanh(z64 @ w1_ + b1_[0])                 # (N, M, H)
    s = (h @ w2_)[..., 0]                           # (N, M)
    w = s.mean(axis=0)                              # (M,)
    e = np.exp(w - w.max())
    beta = e / e.sum()                              # (M,)
    out = (beta[None, :, None] * z64).sum(axis=1)   # (N, D)
    return out, beta[None, :]


if __name__ == "__main__":
    # Small but lane-dense problem: 256 nodes, 4 metapaths, in_size = 128,
    # hidden_size = 128 (the module's default).
    N, M, D, H = 256, 4, 128, 128

    key = jax.random.PRNGKey(0)
    kz, kw1, kb1, kw2 = jax.random.split(key, 4)

    z = jax.random.normal(kz, (N, M, D), dtype=jnp.float32)
    # nn.Linear-style init (uniform(-1/sqrt(fan_in), 1/sqrt(fan_in))), stored transposed.
    bound1 = 1.0 / np.sqrt(D)
    w1 = jax.random.uniform(kw1, (D, H), jnp.float32, -bound1, bound1)
    b1 = jax.random.uniform(kb1, (1, H), jnp.float32, -bound1, bound1)
    bound2 = 1.0 / np.sqrt(H)
    w2 = jax.random.uniform(kw2, (H, 1), jnp.float32, -bound2, bound2)

    # Small node_tile so the demo exercises the multi-tile accumulation path.
    out, beta = semantic_attention(z, w1, b1, w2, node_tile=64)
    out = jax.block_until_ready(out)
    beta = jax.block_until_ready(beta)

    out_ref, beta_ref = semantic_attention_ref_np(z, w1, b1, w2)
    np.testing.assert_allclose(np.asarray(beta), beta_ref, rtol=1e-5, atol=1e-5)
    np.testing.assert_allclose(np.asarray(out), out_ref, rtol=1e-4, atol=1e-5)

    # bf16 projection-matmul fast path (v6e/v7x MXU); scores/softmax/weighted sum
    # stay in f32, so the result only drifts at bf16-input precision.
    out_bf, beta_bf = semantic_attention(z, w1, b1, w2, node_tile=64,
                                         use_bf16_matmul=True)
    out_bf = jax.block_until_ready(out_bf)
    beta_bf = jax.block_until_ready(beta_bf)
    np.testing.assert_allclose(np.asarray(beta_bf), beta_ref, rtol=0, atol=1e-2)
    np.testing.assert_allclose(np.asarray(out_bf), out_ref, rtol=0, atol=5e-2)

    # TODO(synk): the PyTorch module prints beta inside forward(); that host-side
    # print side effect is returned as the `beta` output here instead of printed.

    print("KERNEL_OK")
</pallas_src>

<mosaic_0001>
module attributes {stable_mosaic.version = 11 : i64} {
  func.func @_score_kernel(%arg0: i32, %arg1: memref<256x128xf32, #tpu.memory_space<vmem>>, %arg2: memref<4x256xf32, #tpu.memory_space<vmem>>, %arg3: memref<128x128xf32, #tpu.memory_space<vmem>>, %arg4: memref<1x128xf32, #tpu.memory_space<vmem>>, %arg5: memref<1x128xf32, #tpu.memory_space<vmem>>, %arg6: memref<4x1xf32, #tpu.memory_space<vmem>>, %arg7: memref<4x128xf32, #tpu.memory_space<vmem>>) attributes {dimension_semantics = [#tpu.dimension_semantics<arbitrary>], iteration_bounds = array<i64: 4>, scalar_prefetch = 0 : i64, scratch_operands = 1 : i64, tpu.core_type = #tpu.core_type<tc>, window_params = [{transform_indices = @transform_0, window_bounds = array<i64: 256, 128>}, {pipeline_mode = #tpu.pipeline_mode<synchronous>, transform_indices = @transform_1, window_bounds = array<i64: 4, 256>}, {pipeline_mode = #tpu.pipeline_mode<synchronous>, transform_indices = @transform_2, window_bounds = array<i64: 128, 128>}, {pipeline_mode = #tpu.pipeline_mode<synchronous>, transform_indices = @transform_3, window_bounds = array<i64: 1, 128>}, {pipeline_mode = #tpu.pipeline_mode<synchronous>, transform_indices = @transform_4, window_bounds = array<i64: 1, 128>}, {pipeline_mode = #tpu.pipeline_mode<synchronous>, transform_indices = @transform_5, window_bounds = array<i64: 4, 1>}]} {
    %c0_i32 = arith.constant 0 : i32
    %0 = arith.cmpi eq, %arg0, %c0_i32 : i32
    %1 = arith.extui %0 : i1 to i32
    %c0_i32_0 = arith.constant 0 : i32
    %2 = arith.cmpi ne, %1, %c0_i32_0 : i32
    scf.if %2 {
      %cst_14 = arith.constant 0.000000e+00 : f32
      %18 = vector.broadcast %cst_14 : f32 to vector<4x128xf32>
      %c0_15 = arith.constant 0 : index
      %c0_16 = arith.constant 0 : index
      %19 = vector.load %arg7[%c0_15, %c0_16] : memref<4x128xf32, #tpu.memory_space<vmem>>, vector<4x128xf32>
      tpu.vector_store %arg7[%c0_15, %c0_16], %18 {strides = array<i32>} : memref<4x128xf32, #tpu.memory_space<vmem>>, vector<4x128xf32>,
    } else {
    }
    %c0 = arith.constant 0 : index
    %c0_1 = arith.constant 0 : index
    %3 = vector.load %arg1[%c0, %c0_1] : memref<256x128xf32, #tpu.memory_space<vmem>>, vector<256x128xf32>
    %c0_2 = arith.constant 0 : index
    %c0_3 = arith.constant 0 : index
    %4 = vector.load %arg3[%c0_2, %c0_3] : memref<128x128xf32, #tpu.memory_space<vmem>>, vector<128x128xf32>
    %cst = arith.constant dense<0.000000e+00> : vector<256x128xf32>
    %5 = tpu.matmul %3, %4, %cst {dimension_numbers = #tpu.dot_dimension_numbers<[1], [0], [0], [1], [0, 0, 1, 1], [], []>} : vector<256x128xf32>, vector<128x128xf32>, vector<256x128xf32> -> vector<256x128xf32>
    %c0_4 = arith.constant 0 : index
    %c0_5 = arith.constant 0 : index
    %6 = vector.load %arg4[%c0_4, %c0_5] : memref<1x128xf32, #tpu.memory_space<vmem>>, vector<1x128xf32>
    %7 = vector.broadcast %6 : vector<1x128xf32> to vector<256x128xf32>
    %8 = arith.addf %5, %7 : vector<256x128xf32>
    %9 = math.tanh %8 : vector<256x128xf32>
    %c0_6 = arith.constant 0 : index
    %c0_7 = arith.constant 0 : index
    %10 = vector.load %arg7[%c0_6, %c0_7] : memref<4x128xf32, #tpu.memory_space<vmem>>, vector<4x128xf32>
    %c0_8 = arith.constant 0 : index
    %c0_9 = arith.constant 0 : index
    %11 = vector.load %arg2[%c0_8, %c0_9] : memref<4x256xf32, #tpu.memory_space<vmem>>, vector<4x256xf32>
    %cst_10 = arith.constant dense<0.000000e+00> : vector<4x128xf32>
    %12 = tpu.matmul %11, %9, %cst_10 {dimension_numbers = #tpu.dot_dimension_numbers<[1], [0], [0], [1], [0, 0, 1, 1], [], []>} : vector<4x256xf32>, vector<256x128xf32>, vector<4x128xf32> -> vector<4x128xf32>
    %13 = arith.addf %10, %12 : vector<4x128xf32>
    %c0_11 = arith.constant 0 : index
    %c0_12 = arith.constant 0 : index
    %14 = vector.load %arg7[%c0_11, %c0_12] : memref<4x128xf32, #tpu.memory_space<vmem>>, vector<4x128xf32>
    tpu.vector_store %arg7[%c0_11, %c0_12], %13 {strides = array<i32>} : memref<4x128xf32, #tpu.memory_space<vmem>>, vector<4x128xf32>,
    %c3_i32 = arith.constant 3 : i32
    %15 = arith.cmpi eq, %arg0, %c3_i32 : i32
    %16 = arith.extui %15 : i1 to i32
    %c0_i32_13 = arith.constant 0 : i32
    %17 = arith.cmpi ne, %16, %c0_i32_13 : i32
    scf.if %17 {
      %c0_14 = arith.constant 0 : index
      %c0_15 = arith.constant 0 : index
      %18 = vector.load %arg7[%c0_14, %c0_15] : memref<4x128xf32, #tpu.memory_space<vmem>>, vector<4x128xf32>
      %cst_16 = arith.constant 3.906250e-03 : f32
      %19 = vector.broadcast %cst_16 : f32 to vector<4x128xf32>
      %20 = arith.mulf %18, %19 : vector<4x128xf32>
      %c0_17 = arith.constant 0 : index
      %c0_18 = arith.constant 0 : index
      %21 = vector.load %arg5[%c0_17, %c0_18] : memref<1x128xf32, #tpu.memory_space<vmem>>, vector<1x128xf32>
      %22 = vector.broadcast %21 : vector<1x128xf32> to vector<4x128xf32>
      %23 = arith.mulf %20, %22 : vector<4x128xf32>
      %cst_19 = arith.constant dense<0.000000e+00> : vector<4xf32>
      %24 = vector.multi_reduction <add>, %23, %cst_19 [1] : vector<4x128xf32> to vector<4xf32>
      %25 = vector.shape_cast %24 : vector<4xf32> to vector<4x1xf32>
      %26 = vector.shape_cast %25 : vector<4x1xf32> to vector<1x4x1xf32>
      %cst_20 = arith.constant dense<0xFF800000> : vector<1xf32>
      %27 = vector.multi_reduction <maximumf>, %26, %cst_20 [1, 2] : vector<1x4x1xf32> to vector<1xf32>
      %28 = vector.shape_cast %27 : vector<1xf32> to vector<1x1x1xf32>
      %29 = vector.extract %28[0, 0, 0] : f32 from vector<1x1x1xf32>
      %30 = vector.broadcast %29 : f32 to vector<4x1xf32>
      %31 = arith.subf %25, %30 : vector<4x1xf32>
      %32 = math.exp %31 : vector<4x1xf32>
      %33 = vector.shape_cast %32 : vector<4x1xf32> to vector<1x4x1xf32>
      %cst_21 = arith.constant dense<0.000000e+00> : vector<1xf32>
      %34 = vector.multi_reduction <add>, %33, %cst_21 [1, 2] : vector<1x4x1xf32> to vector<1xf32>
      %35 = vector.shape_cast %34 : vector<1xf32> to vector<1x1x1xf32>
      %36 = vector.extract %35[0, 0, 0] : f32 from vector<1x1x1xf32>
      %37 = vector.broadcast %36 : f32 to vector<4x1xf32>
      %38 = arith.divf %32, %37 : vector<4x1xf32>
      %c0_22 = arith.constant 0 : index
      %c0_23 = arith.constant 0 : index
      %39 = vector.load %arg6[%c0_22, %c0_23] : memref<4x1xf32, #tpu.memory_space<vmem>>, vector<4x1xf32>
      tpu.vector_store %arg6[%c0_22, %c0_23], %38 {strides = array<i32>} : memref<4x1xf32, #tpu.memory_space<vmem>>, vector<4x1xf32>,
    } else {
    }
    return
  }
  func.func @transform_0(%arg0: i32) -> (i32, i32) {
    %c0_i32 = arith.constant 0 : i32
    %c0_i32_0 = arith.constant 0 : i32
    return %arg0, %c0_i32 : i32, i32
  }
  func.func @transform_1(%arg0: i32) -> (i32, i32) {
    %c0_i32 = arith.constant 0 : i32
    %c0_i32_0 = arith.constant 0 : i32
    %c0_i32_1 = arith.constant 0 : i32
    return %c0_i32, %c0_i32_0 : i32, i32
  }
  func.func @transform_2(%arg0: i32) -> (i32, i32) {
    %c0_i32 = arith.constant 0 : i32
    %c0_i32_0 = arith.constant 0 : i32
    %c0_i32_1 = arith.constant 0 : i32
    return %c0_i32, %c0_i32_0 : i32, i32
  }
  func.func @transform_3(%arg0: i32) -> (i32, i32) {
    %c0_i32 = arith.constant 0 : i32
    %c0_i32_0 = arith.constant 0 : i32
    %c0_i32_1 = arith.constant 0 : i32
    return %c0_i32, %c0_i32_0 : i32, i32
  }
  func.func @transform_4(%arg0: i32) -> (i32, i32) {
    %c0_i32 = arith.constant 0 : i32
    %c0_i32_0 = arith.constant 0 : i32
    %c0_i32_1 = arith.constant 0 : i32
    return %c0_i32, %c0_i32_0 : i32, i32
  }
  func.func @transform_5(%arg0: i32) -> (i32, i32) {
    %c0_i32 = arith.constant 0 : i32
    %c0_i32_0 = arith.constant 0 : i32
    %c0_i32_1 = arith.constant 0 : i32
    return %c0_i32, %c0_i32_0 : i32, i32
  }
}

</mosaic_0001>

<llo_original>
// kernel: tpu_custom_call.1
$region0: #{tpu_custom_call.1}
  #allocation0 [shape = 'u32[]', space=smem, size = 0x4, offset = 0x4, fixed_abs, tag = 'smem constant byte address 0x4 - core index']
  #allocation1 [shape = 'u32[144,128]{1,0:T(1,128)}', space=vmem, size = 0x12000, scoped, tag = 'internal scratch']
  #allocation2 [shape = 'f32[4,128]{1,0:T(4,128)}', space=vmem, size = 0x800, scoped, tag = 'scratch operand']
  %s0 = inlined_call_operand.hbm [shape: f32[1024,128], index: 0, kind: input, shape index: {}]
  %s1 = inlined_call_operand.hbm [shape: f32[4,256], index: 1, kind: input, shape index: {}]
  %s2 = inlined_call_operand.hbm [shape: f32[128,128], index: 2, kind: input, shape index: {}]
  %s3 = inlined_call_operand.vmem [shape: f32[1,128], index: 3, kind: input, shape index: {}]
  %s4 = inlined_call_operand.vmem [shape: f32[1,128], index: 4, kind: input, shape index: {}]
  %s5 = inlined_call_operand.vmem [shape: f32[4,1], index: 5, kind: output, shape index: {}]
  %s6 = sld [smem:[#allocation0]]
  $region73: #{tpu_custom_call.1} parent=0
    _
  %s8 = ssub.s32 1, %s6
  %s9 = scalar_select 0, %s8, %s6
  $region1: #{tpu_custom_call.1} parent=0
    #allocation3 [shape = 'u8[262144]{0}', space=vmem, size = 0x40000, scoped, tag = 'input window, operand 0']
    #allocation4 [shape = 's32[2]{0}', space=sflag, size = 0x8, scoped, tag = 'scoped memory for tpu_custom_call.1']
    #allocation5 [shape = 'u8[4096]{0}', space=vmem, size = 0x1000, scoped, tag = 'input window, operand 1, single buffered']
    #allocation6 [shape = 's32[1]{0}', space=sflag, size = 0x4, scoped, tag = 'scoped memory for tpu_custom_call.1']
    #allocation7 [shape = 'u8[65536]{0}', space=vmem, size = 0x10000, scoped, tag = 'input window, operand 2, single buffered']
    %10 = vsyncpa [#allocation4], 0
    %s11 = scalar_lea.sflag [#allocation4], 1
    %12 = vsyncpa %s11, 0
    %13 = vsyncpa [#allocation6], 0
    loop: start=0, step=1, limit=6
    $region2: #{tpu_custom_call.1} parent=1 // loop_pre_header
      _
    $region3: #{tpu_custom_call.1} parent=1 // loop_header
      %s15 = sphi 0, %s19
      %p16 = scmp.ge.s32.totalorder %s15, 6
      %s25 = sphi 0, %s27
      %s28 = sphi 0, %s25
      %s29 = sphi 0, %s28
      %s45 = sphi 0, %s29
      %s49 = sphi 0, %s49
      %s51 = sphi 0, %s49
      %s52 = sphi 0, %s51
      %s66 = sphi 0, %s52
      %s70 = sphi 0, %s70
      %s72 = sphi 0, %s70
      %s73 = sphi 0, %s72
      %s87 = sphi 0, %s73
      %s91 = sphi 0, %s91
      %s93 = sphi 0, %s91
      %s94 = sphi 0, %s93
      %s108 = sphi 0, %s94
      %s112 = sphi 0, %s112
      %s114 = sphi 0, %s112
      %s115 = sphi 0, %s114
      %s129 = sphi 0, %s115
      %s133 = sphi 0, %s133
      %s135 = sphi 0, %s133
      %s136 = sphi 0, %s135
      %s150 = sphi 0, %s136
    $region4: #{tpu_custom_call.1} parent=1 // loop_header_branch
      %18 = sbr.rel (%p16) target = $region8
    $region5: #{tpu_custom_call.1} parent=1 // loop_body
      %s20 = ssub.s32 %s15, 1
      %s21 = ssub.s32 %s15, 2
      %s22 = sadd.s32 %s15, 1
      %s23 = ssub.s32 %s15, %s22
      %p24 = scmp.eq.s32.totalorder %s23, 0
      %s26 = sadd.s32 %s25, 1
      %s27 = scalar_select %p24, %s25, %s26
      %p30 = pneg %p24
      %p31 = scmp.eq.s32.totalorder %s15, 3
      %p32 = por %p30, %p31
      %p33 = scmp.ne.s32.totalorder %s25, %s28
      %p34 = scmp.eq.s32.totalorder %s15, 0
      %p35 = por %p33, %p34
      %p36 = scmp.ne.s32.totalorder %s25, %s28
      %p37 = scmp.eq.s32.totalorder %s20, 3
      %p38 = por %p36, %p37
      %p39 = scmp.ne.s32.totalorder %s28, %s29
      %p40 = scmp.eq.s32.totalorder %s20, 0
      %p41 = por %p39, %p40
      %p42 = scmp.ne.s32.totalorder %s28, %s29
      %p43 = scmp.eq.s32.totalorder %s21, 3
      %p44 = por %p42, %p43
      %p46 = scmp.ne.s32.totalorder %s29, %s45
      %p47 = scmp.eq.s32.totalorder %s21, 0
      %p48 = por %p46, %p47
      %s50 = sadd.s32 %s49, 1
      %p53 = scmp.eq.s32.totalorder %s15, 3
      %p54 = scmp.ne.s32.totalorder %s49, %s51
      %p55 = scmp.eq.s32.totalorder %s15, 0
      %p56 = por %p54, %p55
      %p57 = scmp.ne.s32.totalorder %s49, %s51
      %p58 = scmp.eq.s32.totalorder %s20, 3
      %p59 = por %p57, %p58
      %p60 = scmp.ne.s32.totalorder %s51, %s52
      %p61 = scmp.eq.s32.totalorder %s20, 0
      %p62 = por %p60, %p61
      %p63 = scmp.ne.s32.totalorder %s51, %s52
      %p64 = scmp.eq.s32.totalorder %s21, 3
      %p65 = por %p63, %p64
      %p67 = scmp.ne.s32.totalorder %s52, %s66
      %p68 = scmp.eq.s32.totalorder %s21, 0
      %p69 = por %p67, %p68
      %s71 = sadd.s32 %s70, 1
      %p74 = scmp.eq.s32.totalorder %s15, 3
      %p75 = scmp.ne.s32.totalorder %s70, %s72
      %p76 = scmp.eq.s32.totalorder %s15, 0
      %p77 = por %p75, %p76
      %p78 = scmp.ne.s32.totalorder %s70, %s72
      %p79 = scmp.eq.s32.totalorder %s20, 3
      %p80 = por %p78, %p79
      %p81 = scmp.ne.s32.totalorder %s72, %s73
      %p82 = scmp.eq.s32.totalorder %s20, 0
      %p83 = por %p81, %p82
      %p84 = scmp.ne.s32.totalorder %s72, %s73
      %p85 = scmp.eq.s32.totalorder %s21, 3
      %p86 = por %p84, %p85
      %p88 = scmp.ne.s32.totalorder %s73, %s87
      %p89 = scmp.eq.s32.totalorder %s21, 0
      %p90 = por %p88, %p89
      %s92 = sadd.s32 %s91, 1
      %p95 = scmp.eq.s32.totalorder %s15, 3
      %p96 = scmp.ne.s32.totalorder %s91, %s93
      %p97 = scmp.eq.s32.totalorder %s15, 0
      %p98 = por %p96, %p97
      %p99 = scmp.ne.s32.totalorder %s91, %s93
      %p100 = scmp.eq.s32.totalorder %s20, 3
      %p101 = por %p99, %p100
      %p102 = scmp.ne.s32.totalorder %s93, %s94
      %p103 = scmp.eq.s32.totalorder %s20, 0
      %p104 = por %p102, %p103
      %p105 = scmp.ne.s32.totalorder %s93, %s94
      %p106 = scmp.eq.s32.totalorder %s21, 3
      %p107 = por %p105, %p106
      %p109 = scmp.ne.s32.totalorder %s94, %s108
      %p110 = scmp.eq.s32.totalorder %s21, 0
      %p111 = por %p109, %p110
      %s113 = sadd.s32 %s112, 1
      %p116 = scmp.eq.s32.totalorder %s15, 3
      %p117 = scmp.ne.s32.totalorder %s112, %s114
      %p118 = scmp.eq.s32.totalorder %s15, 0
      %p119 = por %p117, %p118
      %p120 = scmp.ne.s32.totalorder %s112, %s114
      %p121 = scmp.eq.s32.totalorder %s20, 3
      %p122 = por %p120, %p121
      %p123 = scmp.ne.s32.totalorder %s114, %s115
      %p124 = scmp.eq.s32.totalorder %s20, 0
      %p125 = por %p123, %p124
      %p126 = scmp.ne.s32.totalorder %s114, %s115
      %p127 = scmp.eq.s32.totalorder %s21, 3
      %p128 = por %p126, %p127
      %p130 = scmp.ne.s32.totalorder %s115, %s129
      %p131 = scmp.eq.s32.totalorder %s21, 0
      %p132 = por %p130, %p131
      %s134 = sadd.s32 %s133, 1
      %p137 = scmp.eq.s32.totalorder %s15, 3
      %p138 = scmp.ne.s32.totalorder %s133, %s135
      %p139 = scmp.eq.s32.totalorder %s15, 0
      %p140 = por %p138, %p139
      %p141 = scmp.ne.s32.totalorder %s133, %s135
      %p142 = scmp.eq.s32.totalorder %s20, 3
      %p143 = por %p141, %p142
      %p144 = scmp.ne.s32.totalorder %s135, %s136
      %p145 = scmp.eq.s32.totalorder %s20, 0
      %p146 = por %p144, %p145
      %p147 = scmp.ne.s32.totalorder %s135, %s136
      %p148 = scmp.eq.s32.totalorder %s21, 3
      %p149 = por %p147, %p148
      %p151 = scmp.ne.s32.totalorder %s136, %s150
      %p152 = scmp.eq.s32.totalorder %s21, 0
      %p153 = por %p151, %p152
      %p154 = scmp.le.s32.totalorder 1, %s15
      %p155 = scmp.lt.s32.totalorder %s15, 5
      %p156 = pnand %p154, %p155
      %p157 = pneg %p156
      // Predicated region
      $region9: #{tpu_custom_call.1} parent=5 // pred_check
        _
      $region10: #{tpu_custom_call.1} parent=5 // pred_check_branch
        %159 = sbr.rel (%p156) target = $region12
      $region11: #{tpu_custom_call.1} parent=5 // pred_region
        %s160 = ssub.s32 %s15, 1
        // Predicated region
        $region13: #{tpu_custom_call.1} parent=11 // pred_check
          %p161 = pneg %p62
        $region14: #{tpu_custom_call.1} parent=11 // pred_check_branch
          %163 = sbr.rel (%p161) target = $region16
        $region15: #{tpu_custom_call.1} parent=11 // pred_region
          %s165 = ssub.s32 128, 128
          %166 = vsyncadd [#allocation6], %s165
          %s168 = sshll.u32 [#allocation5], 4
          %s169 = int_to_ptr.vmem [resolvable:$true] %s168
          %171 = dma.hbm_to_vmem [thread:$0]  %s1, 128, %s169, [#allocation6]
        $region16: #{tpu_custom_call.1} parent=11 // pred_fallthru
          _
        // Predicated region
        $region17: #{tpu_custom_call.1} parent=11 // pred_check
          %p172 = pneg %p83
        $region18: #{tpu_custom_call.1} parent=11 // pred_check_branch
          %174 = sbr.rel (%p172) target = $region20
        $region19: #{tpu_custom_call.1} parent=11 // pred_region
          %s176 = ssub.s32 2048, 2048
          %177 = vsyncadd [#allocation6], %s176
          %s178 = sshll.u32 [#allocation7], 4
          %s179 = int_to_ptr.vmem [resolvable:$true] %s178
          %184 = dma.hbm_to_vmem [thread:$0]  %s2, 2048, %s179, [#allocation6], 128, 128, 8
        $region20: #{tpu_custom_call.1} parent=11 // pred_fallthru
          _
        // Predicated region
        $region21: #{tpu_custom_call.1} parent=11 // pred_check
          %p185 = pneg %p104
        $region22: #{tpu_custom_call.1} parent=11 // pred_check_branch
          %187 = sbr.rel (%p185) target = $region24
        $region23: #{tpu_custom_call.1} parent=11 // pred_region
          _
        $region24: #{tpu_custom_call.1} parent=11 // pred_fallthru
          _
        // Predicated region
        $region25: #{tpu_custom_call.1} parent=11 // pred_check
          %p188 = pneg %p125
        $region26: #{tpu_custom_call.1} parent=11 // pred_check_branch
          %190 = sbr.rel (%p188) target = $region28
        $region27: #{tpu_custom_call.1} parent=11 // pred_region
          _
        $region28: #{tpu_custom_call.1} parent=11 // pred_fallthru
          _
      $region12: #{tpu_custom_call.1} parent=5 // pred_fallthru
        _
      %p191 = scmp.lt.s32.totalorder %s15, 4
      // Predicated region
      $region29: #{tpu_custom_call.1} parent=5 // pred_check
        %p192 = pneg %p191
      $region30: #{tpu_custom_call.1} parent=5 // pred_check_branch
        %194 = sbr.rel (%p192) target = $region32
      $region31: #{tpu_custom_call.1} parent=5 // pred_region
        // Predicated region
        $region33: #{tpu_custom_call.1} parent=31 // pred_check
          %p195 = pneg %p35
        $region34: #{tpu_custom_call.1} parent=31 // pred_check_branch
          %197 = sbr.rel (%p195) target = $region36
        $region35: #{tpu_custom_call.1} parent=31 // pred_region
          %s198 = sand.u32 %s25, 1
          %s199 = scalar_lea.sflag [#allocation4], %s198
          %s200 = sand.u32 %s25, 1
          %s201 = smul.addr %s200, 256
          %s202 = scalar_lea.vmem [#allocation3], %s201
          %s203 = smul.u32 32, %s15
          %s205 = ssub.s32 4096, 4096
          %206 = vsyncadd %s199, %s205
          %s207 = smul.addr %s203, 128
          %s208 = scalar_lea.hbm %s0, %s207
          %s209 = sshll.u32 %s202, 4
          %s210 = int_to_ptr.vmem [resolvable:$true] %s209
          %215 = dma.hbm_to_vmem [thread:$0]  %s208, 4096, %s210, %s199, 128, 128, 8
        $region36: #{tpu_custom_call.1} parent=31 // pred_fallthru
          _
      $region32: #{tpu_custom_call.1} parent=5 // pred_fallthru
        _
      %p216 = scmp.le.s32.totalorder 1, %s15
      %p217 = scmp.lt.s32.totalorder %s15, 5
      %p218 = pnand %p216, %p217
      %p219 = pneg %p218
      // Predicated region
      $region37: #{tpu_custom_call.1} parent=5 // pred_check
        _
      $region38: #{tpu_custom_call.1} parent=5 // pred_check_branch
        %221 = sbr.rel (%p218) target = $region40
      $region39: #{tpu_custom_call.1} parent=5 // pred_region
        %s222 = ssub.s32 %s15, 1
        %s223 = sand.u32 %s28, 1
        %s224 = scalar_lea.sflag [#allocation4], %s223
        %s225 = sand.u32 %s28, 1
        %s226 = smul.addr %s225, 256
        %s227 = scalar_lea.vmem [#allocation3], %s226
        // Predicated region
        $region41: #{tpu_custom_call.1} parent=39 // pred_check
          %p228 = pneg %p41
        $region42: #{tpu_custom_call.1} parent=39 // pred_check_branch
          %230 = sbr.rel (%p228) target = $region44
        $region43: #{tpu_custom_call.1} parent=39 // pred_region
          %231 = dma.done %s224, 4096
        $region44: #{tpu_custom_call.1} parent=39 // pred_fallthru
          _
        // Predicated region
        $region45: #{tpu_custom_call.1} parent=39 // pred_check
          %p232 = pneg %p62
        $region46: #{tpu_custom_call.1} parent=39 // pred_check_branch
          %234 = sbr.rel (%p232) target = $region48
        $region47: #{tpu_custom_call.1} parent=39 // pred_region
          %235 = dma.done [#allocation6], 128
        $region48: #{tpu_custom_call.1} parent=39 // pred_fallthru
          _
        // Predicated region
        $region49: #{tpu_custom_call.1} parent=39 // pred_check
          %p236 = pneg %p83
        $region50: #{tpu_custom_call.1} parent=39 // pred_check_branch
          %238 = sbr.rel (%p236) target = $region52
        $region51: #{tpu_custom_call.1} parent=39 // pred_region
          %239 = dma.done [#allocation6], 2048
        $region52: #{tpu_custom_call.1} parent=39 // pred_fallthru
          _
        %s240 = sand.u32 %s28, 1
        %s241 = scalar_lea.sflag [#allocation4], %s240
        %s242 = sand.u32 %s28, 1
        %s243 = smul.addr %s242, 256
        %s244 = scalar_lea.vmem [#allocation3], %s243
        %p245 = pneg %p41
        %p246 = pneg %p38
        %p247 = pneg %p62
        %p248 = pneg %p59
        %p249 = pneg %p83
        %p250 = pneg %p80
        %p251 = pneg %p104
        %p252 = pneg %p101
        %p253 = pneg %p125
        %p254 = pneg %p122
        %p255 = pneg %p146
        %p256 = pneg %p143
        %s257 = smul.u32 32, %s20
        %p258 = scmp.eq.s32.totalorder %s20, 0
        // Predicated region
        $region53: #{tpu_custom_call.1} parent=39 // pred_check
          %p259 = pneg %p258
        $region54: #{tpu_custom_call.1} parent=39 // pred_check_branch
          %261 = sbr.rel (%p259) target = $region56
        $region55: #{tpu_custom_call.1} parent=39 // pred_region
          %262 = vst [vmem:[#allocation2] sm:$0xf] 0.0
        $region56: #{tpu_custom_call.1} parent=39 // pred_fallthru
          _
        %v263 = vld [vmem:[%s227] sm:$0xff]
        %v264 = vld [vmem:[%s227 + $0x8] sm:$0xff]
        %v265 = vld [vmem:[%s227 + $0x10] sm:$0xff]
        %v266 = vld [vmem:[%s227 + $0x18] sm:$0xff]
        %v267 = vld [vmem:[%s227 + $0x20] sm:$0xff]
        %v268 = vld [vmem:[%s227 + $0x28] sm:$0xff]
        %v269 = vld [vmem:[%s227 + $0x30] sm:$0xff]
        %v270 = vld [vmem:[%s227 + $0x38] sm:$0xff]
        %v271 = vld [vmem:[%s227 + $0x40] sm:$0xff]
        %v272 = vld [vmem:[%s227 + $0x48] sm:$0xff]
        %v273 = vld [vmem:[%s227 + $0x50] sm:$0xff]
        %v274 = vld [vmem:[%s227 + $0x58] sm:$0xff]
        %v275 = vld [vmem:[%s227 + $0x60] sm:$0xff]
        %v276 = vld [vmem:[%s227 + $0x68] sm:$0xff]
        %v277 = vld [vmem:[%s227 + $0x70] sm:$0xff]
        %v278 = vld [vmem:[%s227 + $0x78] sm:$0xff]
        %v279 = vld [vmem:[%s227 + $0x80] sm:$0xff]
        %v280 = vld [vmem:[%s227 + $0x88] sm:$0xff]
        %v281 = vld [vmem:[%s227 + $0x90] sm:$0xff]
        %v282 = vld [vmem:[%s227 + $0x98] sm:$0xff]
        %v283 = vld [vmem:[%s227 + $0xa0] sm:$0xff]
        %v284 = vld [vmem:[%s227 + $0xa8] sm:$0xff]
        %v285 = vld [vmem:[%s227 + $0xb0] sm:$0xff]
        %v286 = vld [vmem:[%s227 + $0xb8] sm:$0xff]
        %v287 = vld [vmem:[%s227 + $0xc0] sm:$0xff]
        %v288 = vld [vmem:[%s227 + $0xc8] sm:$0xff]
        %v289 = vld [vmem:[%s227 + $0xd0] sm:$0xff]
        %v290 = vld [vmem:[%s227 + $0xd8] sm:$0xff]
        %v291 = vld [vmem:[%s227 + $0xe0] sm:$0xff]
        %v292 = vld [vmem:[%s227 + $0xe8] sm:$0xff]
        %v293 = vld [vmem:[%s227 + $0xf0] sm:$0xff]
        %v294 = vld [vmem:[%s227 + $0xf8] sm:$0xff]
        %v295 = vld [vmem:[#allocation7] sm:$0xff]
        %v296 = vld [vmem:[#allocation7 + $0x8] sm:$0xff]
        %v297 = vld [vmem:[#allocation7 + $0x10] sm:$0xff]
        %v298 = vld [vmem:[#allocation7 + $0x18] sm:$0xff]
        %v299 = vld [vmem:[#allocation7 + $0x20] sm:$0xff]
        %v300 = vld [vmem:[#allocation7 + $0x28] sm:$0xff]
        %v301 = vld [vmem:[#allocation7 + $0x30] sm:$0xff]
        %v302 = vld [vmem:[#allocation7 + $0x38] sm:$0xff]
        %v303 = vld [vmem:[#allocation7 + $0x40] sm:$0xff]
        %v304 = vld [vmem:[#allocation7 + $0x48] sm:$0xff]
        %v305 = vld [vmem:[#allocation7 + $0x50] sm:$0xff]
        %v306 = vld [vmem:[#allocation7 + $0x58] sm:$0xff]
        %v307 = vld [vmem:[#allocation7 + $0x60] sm:$0xff]
        %v308 = vld [vmem:[#allocation7 + $0x68] sm:$0xff]
        %v309 = vld [vmem:[#allocation7 + $0x70] sm:$0xff]
        %v310 = vld [vmem:[#allocation7 + $0x78] sm:$0xff]
        %v311 = vld [vmem:[%s3] sm:$0x1]
        %v313 = vlaneseq
        %v314 = vshrl.u32 %v313, 7
        %v315 = vsub.s32 0, %v314
        %v316 = vrot.slane %v311, %v315
        %318 = vmatprep.subr.mxu0 0.0
        %319 = vmatpush1.msra.mxu0 %v295
        %320 = vmatprep.subr.mxu0 0.0
        %321 = vmatpush1.msra.mxu0 %v296
        %322 = vmatprep.subr.mxu0 0.0
        %323 = vmatpush1.msra.mxu0 %v297
        %324 = vmatprep.subr.mxu0 0.0
        %325 = vmatpush1.msra.mxu0 %v298
        %326 = vmatprep.subr.mxu0 0.0
        %327 = vmatpush1.msra.mxu0 %v299
        %328 = vmatprep.subr.mxu0 0.0
        %329 = vmatpush1.msra.mxu0 %v300
        %330 = vmatprep.subr.mxu0 0.0
        %331 = vmatpush1.msra.mxu0 %v301
        %332 = vmatprep.subr.mxu0 0.0
        %333 = vmatpush1.msra.mxu0 %v302
        %334 = vmatprep.subr.mxu0 0.0
        %335 = vmatpush1.msra.mxu0 %v303
        %336 = vmatprep.subr.mxu0 0.0
        %337 = vmatpush1.msra.mxu0 %v304
        %338 = vmatprep.subr.mxu0 0.0
        %339 = vmatpush1.msra.mxu0 %v305
        %340 = vmatprep.subr.mxu0 0.0
        %341 = vmatpush1.msra.mxu0 %v306
        %342 = vmatprep.subr.mxu0 0.0
        %343 = vmatpush1.msra.mxu0 %v307
        %344 = vmatprep.subr.mxu0 0.0
        %345 = vmatpush1.msra.mxu0 %v308
        %346 = vmatprep.subr.mxu0 0.0
        %347 = vmatpush1.msra.mxu0 %v309
        %348 = vmatprep.subr.mxu0 0.0
        %349 = vmatpush1.msra.mxu0 %v310
        %350 = vmatprep.subr.mxu0 0.0
        %351 = vmatpush1.msra.mxu0 0.0
        %352 = vmatprep.subr.mxu0 0.0
        %353 = vmatpush1.msra.mxu0 0.0
        %354 = vmatprep.subr.mxu0 0.0
        %355 = vmatpush1.msra.mxu0 0.0
        %356 = vmatprep.subr.mxu0 0.0
        %357 = vmatpush1.msra.mxu0 0.0
        %358 = vmatprep.subr.mxu0 0.0
        %359 = vmatpush1.msra.mxu0 0.0
        %360 = vmatprep.subr.mxu0 0.0
        %361 = vmatpush1.msra.mxu0 0.0
        %362 = vmatprep.subr.mxu0 0.0
        %363 = vmatpush1.msra.mxu0 0.0
        %364 = vmatprep.subr.mxu0 0.0
        %365 = vmatpush1.msra.mxu0 0.0
        %366 = vmatprep.subr.mxu0 0.0
        %367 = vmatpush1.msra.mxu0 0.0
        %368 = vmatprep.subr.mxu0 0.0
        %369 = vmatpush1.msra.mxu0 0.0
        %370 = vmatprep.subr.mxu0 0.0
        %371 = vmatpush1.msra.mxu0 0.0
        %372 = vmatprep.subr.mxu0 0.0
        %373 = vmatpush1.msra.mxu0 0.0
        %374 = vmatprep.subr.mxu0 0.0
        %375 = vmatpush1.msra.mxu0 0.0
        %376 = vmatprep.subr.mxu0 0.0
        %377 = vmatpush1.msra.mxu0 0.0
        %378 = vmatprep.subr.mxu0 0.0
        %379 = vmatpush1.msra.mxu0 0.0
        %380 = vmatprep.subr.mxu0 0.0
        %381 = vmatpush1.msra.mxu0 0.0
        %382 = vmatprep.mubr.f32.mxu0 0.0
        %383 = vmatmul.mubr.f32.gmra.mrb[0].mxu0 %v263
        %v384 = vpop.f32.mrb[0].mxu0
        %v385 = vadd.f32 %v316, %v384
        %v386 = vpop.f32.mrb[0].mxu0
        %387 = vmatprep.mubr.f32.mxu0 0.0
        %388 = vmatmul.mubr.f32.gmra.mrb[0].mxu0 %v264
        %v389 = vpop.f32.mrb[0].mxu0
        %v390 = vadd.f32 %v316, %v389
        %v391 = vpop.f32.mrb[0].mxu0
        %392 = vmatprep.mubr.f32.mxu0 0.0
        %393 = vmatmul.mubr.f32.gmra.mrb[0].mxu0 %v265
        %v394 = vpop.f32.mrb[0].mxu0
        %v395 = vadd.f32 %v316, %v394
        %v396 = vpop.f32.mrb[0].mxu0
        %397 = vmatprep.mubr.f32.mxu0 0.0
        %398 = vmatmul.mubr.f32.gmra.mrb[0].mxu0 %v266
        %v399 = vpop.f32.mrb[0].mxu0
        %v400 = vadd.f32 %v316, %v399
        %v401 = vpop.f32.mrb[0].mxu0
        %402 = vmatprep.mubr.f32.mxu0 0.0
        %403 = vmatmul.mubr.f32.gmra.mrb[0].mxu0 %v267
        %v404 = vpop.f32.mrb[0].mxu0
        %v405 = vadd.f32 %v316, %v404
        %v406 = vpop.f32.mrb[0].mxu0
        %407 = vmatprep.mubr.f32.mxu0 0.0
        %408 = vmatmul.mubr.f32.gmra.mrb[0].mxu0 %v268
        %v409 = vpop.f32.mrb[0].mxu0
        %v410 = vadd.f32 %v316, %v409
        %v411 = vpop.f32.mrb[0].mxu0
        %412 = vmatprep.mubr.f32.mxu0 0.0
        %413 = vmatmul.mubr.f32.gmra.mrb[0].mxu0 %v269
        %v414 = vpop.f32.mrb[0].mxu0
        %v415 = vadd.f32 %v316, %v414
        %v416 = vpop.f32.mrb[0].mxu0
        %417 = vmatprep.mubr.f32.mxu0 0.0
        %418 = vmatmul.mubr.f32.gmra.mrb[0].mxu0 %v270
        %v419 = vpop.f32.mrb[0].mxu0
        %v420 = vadd.f32 %v316, %v419
        %v421 = vpop.f32.mrb[0].mxu0
        %422 = vmatprep.mubr.f32.mxu0 0.0
        %423 = vmatmul.mubr.f32.gmra.mrb[0].mxu0 %v271
        %v424 = vpop.f32.mrb[0].mxu0
        %v425 = vadd.f32 %v316, %v424
        %v426 = vpop.f32.mrb[0].mxu0
        %427 = vmatprep.mubr.f32.mxu0 0.0
        %428 = vmatmul.mubr.f32.gmra.mrb[0].mxu0 %v272
        %v429 = vpop.f32.mrb[0].mxu0
        %v430 = vadd.f32 %v316, %v429
        %v431 = vpop.f32.mrb[0].mxu0
        %432 = vmatprep.mubr.f32.mxu0 0.0
        %433 = vmatmul.mubr.f32.gmra.mrb[0].mxu0 %v273
        %v434 = vpop.f32.mrb[0].mxu0
        %v435 = vadd.f32 %v316, %v434
        %v436 = vpop.f32.mrb[0].mxu0
        %437 = vmatprep.mubr.f32.mxu0 0.0
        %438 = vmatmul.mubr.f32.gmra.mrb[0].mxu0 %v274
        %v439 = vpop.f32.mrb[0].mxu0
        %v440 = vadd.f32 %v316, %v439
        %v441 = vpop.f32.mrb[0].mxu0
        %442 = vmatprep.mubr.f32.mxu0 0.0
        %443 = vmatmul.mubr.f32.gmra.mrb[0].mxu0 %v275
        %v444 = vpop.f32.mrb[0].mxu0
        %v445 = vadd.f32 %v316, %v444
        %v446 = vpop.f32.mrb[0].mxu0
        %447 = vmatprep.mubr.f32.mxu0 0.0
        %448 = vmatmul.mubr.f32.gmra.mrb[0].mxu0 %v276
        %v449 = vpop.f32.mrb[0].mxu0
        %v450 = vadd.f32 %v316, %v449
        %v451 = vpop.f32.mrb[0].mxu0
        %452 = vmatprep.mubr.f32.mxu0 0.0
        %453 = vmatmul.mubr.f32.gmra.mrb[0].mxu0 %v277
        %v454 = vpop.f32.mrb[0].mxu0
        %v455 = vadd.f32 %v316, %v454
        %v456 = vpop.f32.mrb[0].mxu0
        %457 = vmatprep.mubr.f32.mxu0 0.0
        %458 = vmatmul.mubr.f32.gmra.mrb[0].mxu0 %v278
        %v459 = vpop.f32.mrb[0].mxu0
        %v460 = vadd.f32 %v316, %v459
        %v461 = vpop.f32.mrb[0].mxu0
        %462 = vmatprep.mubr.f32.mxu0 0.0
        %463 = vmatmul.mubr.f32.gmra.mrb[0].mxu0 %v279
        %v464 = vpop.f32.mrb[0].mxu0
        %v465 = vadd.f32 %v316, %v464
        %v466 = vpop.f32.mrb[0].mxu0
        %467 = vmatprep.mubr.f32.mxu0 0.0
        %468 = vmatmul.mubr.f32.gmra.mrb[0].mxu0 %v280
        %v469 = vpop.f32.mrb[0].mxu0
        %v470 = vadd.f32 %v316, %v469
        %v471 = vpop.f32.mrb[0].mxu0
        %472 = vmatprep.mubr.f32.mxu0 0.0
        %473 = vmatmul.mubr.f32.gmra.mrb[0].mxu0 %v281
        %v474 = vpop.f32.mrb[0].mxu0
        %v475 = vadd.f32 %v316, %v474
        %v476 = vpop.f32.mrb[0].mxu0
        %477 = vmatprep.mubr.f32.mxu0 0.0
        %478 = vmatmul.mubr.f32.gmra.mrb[0].mxu0 %v282
        %v479 = vpop.f32.mrb[0].mxu0
        %v480 = vadd.f32 %v316, %v479
        %v481 = vpop.f32.mrb[0].mxu0
        %482 = vmatprep.mubr.f32.mxu0 0.0
        %483 = vmatmul.mubr.f32.gmra.mrb[0].mxu0 %v283
        %v484 = vpop.f32.mrb[0].mxu0
        %v485 = vadd.f32 %v316, %v484
        %v486 = vpop.f32.mrb[0].mxu0
        %487 = vmatprep.mubr.f32.mxu0 0.0
        %488 = vmatmul.mubr.f32.gmra.mrb[0].mxu0 %v284
        %v489 = vpop.f32.mrb[0].mxu0
        %v490 = vadd.f32 %v316, %v489
        %v491 = vpop.f32.mrb[0].mxu0
        %492 = vmatprep.mubr.f32.mxu0 0.0
        %493 = vmatmul.mubr.f32.gmra.mrb[0].mxu0 %v285
        %v494 = vpop.f32.mrb[0].mxu0
        %v495 = vadd.f32 %v316, %v494
        %v496 = vpop.f32.mrb[0].mxu0
        %497 = vmatprep.mubr.f32.mxu0 0.0
        %498 = vmatmul.mubr.f32.gmra.mrb[0].mxu0 %v286
        %v499 = vpop.f32.mrb[0].mxu0
        %v500 = vadd.f32 %v316, %v499
        %v501 = vpop.f32.mrb[0].mxu0
        %502 = vmatprep.mubr.f32.mxu0 0.0
        %503 = vmatmul.mubr.f32.gmra.mrb[0].mxu0 %v287
        %v504 = vpop.f32.mrb[0].mxu0
        %v505 = vadd.f32 %v316, %v504
        %v506 = vpop.f32.mrb[0].mxu0
        %507 = vmatprep.mubr.f32.mxu0 0.0
        %508 = vmatmul.mubr.f32.gmra.mrb[0].mxu0 %v288
        %v509 = vpop.f32.mrb[0].mxu0
        %v510 = vadd.f32 %v316, %v509
        %v511 = vpop.f32.mrb[0].mxu0
        %512 = vmatprep.mubr.f32.mxu0 0.0
        %513 = vmatmul.mubr.f32.gmra.mrb[0].mxu0 %v289
        %v514 = vpop.f32.mrb[0].mxu0
        %v515 = vadd.f32 %v316, %v514
        %v516 = vpop.f32.mrb[0].mxu0
        %517 = vmatprep.mubr.f32.mxu0 0.0
        %518 = vmatmul.mubr.f32.gmra.mrb[0].mxu0 %v290
        %v519 = vpop.f32.mrb[0].mxu0
        %v520 = vadd.f32 %v316, %v519
        %v521 = vpop.f32.mrb[0].mxu0
        %522 = vmatprep.mubr.f32.mxu0 0.0
        %523 = vmatmul.mubr.f32.gmra.mrb[0].mxu0 %v291
        %v524 = vpop.f32.mrb[0].mxu0
        %v525 = vadd.f32 %v316, %v524
        %v526 = vpop.f32.mrb[0].mxu0
        %527 = vmatprep.mubr.f32.mxu0 0.0
        %528 = vmatmul.mubr.f32.gmra.mrb[0].mxu0 %v292
        %v529 = vpop.f32.mrb[0].mxu0
        %v530 = vadd.f32 %v316, %v529
        %v531 = vpop.f32.mrb[0].mxu0
        %532 = vmatprep.mubr.f32.mxu0 0.0
        %533 = vmatmul.mubr.f32.gmra.mrb[0].mxu0 %v293
        %v534 = vpop.f32.mrb[0].mxu0
        %v535 = vadd.f32 %v316, %v534
        %v536 = vpop.f32.mrb[0].mxu0
        %537 = vmatprep.mubr.f32.mxu0 0.0
        %538 = vmatmul.mubr.f32.gmra.mrb[0].mxu0 %v294
        %v539 = vpop.f32.mrb[0].mxu0
        %v540 = vadd.f32 %v316, %v539
        %v541 = vpop.f32.mrb[0].mxu0
        %542 = vdwg.mxu0
        %v543 = vtanh.pop %v385
        %v544 = vtanh.pop %v390
        %v545 = vtanh.pop %v395
        %v546 = vtanh.pop %v400
        %v547 = vtanh.pop %v405
        %v548 = vtanh.pop %v410
        %v549 = vtanh.pop %v415
        %v550 = vtanh.pop %v420
        %v551 = vtanh.pop %v425
        %v552 = vtanh.pop %v430
        %v553 = vtanh.pop %v435
        %v554 = vtanh.pop %v440
        %v555 = vtanh.pop %v445
        %v556 = vtanh.pop %v450
        %v557 = vtanh.pop %v455
        %v558 = vtanh.pop %v460
        %v559 = vtanh.pop %v465
        %v560 = vtanh.pop %v470
        %v561 = vtanh.pop %v475
        %v562 = vtanh.pop %v480
        %v563 = vtanh.pop %v485
        %v564 = vtanh.pop %v490
        %v565 = vtanh.pop %v495
        %v566 = vtanh.pop %v500
        %v567 = vtanh.pop %v505
        %v568 = vtanh.pop %v510
        %v569 = vtanh.pop %v515
        %v570 = vtanh.pop %v520
        %v571 = vtanh.pop %v525
        %v572 = vtanh.pop %v530
        %v573 = vtanh.pop %v535
        %v574 = vtanh.pop %v540
        %v575 = vld [vmem:[#allocation2] sm:$0xf]
        %v576 = vld [vmem:[#allocation5] sm:$0xff]
        %v578 = vcombine.high %v576, %v576
        %580 = vmatprep.subr.mxu0 0.0
        %581 = vmatpush1.msra.mxu0 %v543
        %582 = vmatprep.subr.mxu0 0.0
        %583 = vmatpush1.msra.mxu0 %v544
        %584 = vmatprep.subr.mxu0 0.0
        %585 = vmatpush1.msra.mxu0 %v545
        %586 = vmatprep.subr.mxu0 0.0
        %587 = vmatpush1.msra.mxu0 %v546
        %588 = vmatprep.subr.mxu0 0.0
        %589 = vmatpush1.msra.mxu0 %v547
        %590 = vmatprep.subr.mxu0 0.0
        %591 = vmatpush1.msra.mxu0 %v548
        %592 = vmatprep.subr.mxu0 0.0
        %593 = vmatpush1.msra.mxu0 %v549
        %594 = vmatprep.subr.mxu0 0.0
        %595 = vmatpush1.msra.mxu0 %v550
        %596 = vmatprep.subr.mxu0 0.0
        %597 = vmatpush1.msra.mxu0 %v551
        %598 = vmatprep.subr.mxu0 0.0
        %599 = vmatpush1.msra.mxu0 %v552
        %600 = vmatprep.subr.mxu0 0.0
        %601 = vmatpush1.msra.mxu0 %v553
        %602 = vmatprep.subr.mxu0 0.0
        %603 = vmatpush1.msra.mxu0 %v554
        %604 = vmatprep.subr.mxu0 0.0
        %605 = vmatpush1.msra.mxu0 %v555
        %606 = vmatprep.subr.mxu0 0.0
        %607 = vmatpush1.msra.mxu0 %v556
        %608 = vmatprep.subr.mxu0 0.0
        %609 = vmatpush1.msra.mxu0 %v557
        %610 = vmatprep.subr.mxu0 0.0
        %611 = vmatpush1.msra.mxu0 %v558
        %612 = vmatprep.subr.mxu0 0.0
        %613 = vmatpush1.msra.mxu0 %v559
        %614 = vmatprep.subr.mxu0 0.0
        %615 = vmatpush1.msra.mxu0 %v560
        %616 = vmatprep.subr.mxu0 0.0
        %617 = vmatpush1.msra.mxu0 %v561
        %618 = vmatprep.subr.mxu0 0.0
        %619 = vmatpush1.msra.mxu0 %v562
        %620 = vmatprep.subr.mxu0 0.0
        %621 = vmatpush1.msra.mxu0 %v563
        %622 = vmatprep.subr.mxu0 0.0
        %623 = vmatpush1.msra.mxu0 %v564
        %624 = vmatprep.subr.mxu0 0.0
        %625 = vmatpush1.msra.mxu0 %v565
        %626 = vmatprep.subr.mxu0 0.0
        %627 = vmatpush1.msra.mxu0 %v566
        %628 = vmatprep.subr.mxu0 0.0
        %629 = vmatpush1.msra.mxu0 %v567
        %630 = vmatprep.subr.mxu0 0.0
        %631 = vmatpush1.msra.mxu0 %v568
        %632 = vmatprep.subr.mxu0 0.0
        %633 = vmatpush1.msra.mxu0 %v569
        %634 = vmatprep.subr.mxu0 0.0
        %635 = vmatpush1.msra.mxu0 %v570
        %636 = vmatprep.subr.mxu0 0.0
        %637 = vmatpush1.msra.mxu0 %v571
        %638 = vmatprep.subr.mxu0 0.0
        %639 = vmatpush1.msra.mxu0 %v572
        %640 = vmatprep.subr.mxu0 0.0
        %641 = vmatpush1.msra.mxu0 %v573
        %642 = vmatprep.subr.mxu0 0.0
        %643 = vmatpush1.msra.mxu0 %v574
        %644 = vmatprep.mubr.f32.mxu0 %v578
        %645 = vmatmul.mubr.f32.gmra.mrb[0].mxu0 %v576
        %v646 = vpop.f32.mrb[0].mxu0
        %v647 = vadd.f32 0.0, %v646
        %v648 = vpop.f32.mrb[0].mxu0
        %649 = vdwg.mxu0
        %v650 = vadd.f32 %v575, %v647
        %651 = vst [vmem:[#allocation2] sm:$0xf] %v650
        %p652 = scmp.eq.s32.totalorder %s20, 3
        // Predicated region
        $region57: #{tpu_custom_call.1} parent=39 // pred_check
          %p653 = pneg %p652
        $region58: #{tpu_custom_call.1} parent=39 // pred_check_branch
          %655 = sbr.rel (%p653) target = $region60
        $region59: #{tpu_custom_call.1} parent=39 // pred_region
          %v656 = vld [vmem:[#allocation2] sm:$0xf]
          %v657 = vmul.f32 %v656, 0.00390625
          %v658 = vld [vmem:[%s4] sm:$0x1]
          %v660 = vlaneseq
          %v661 = vshrl.u32 %v660, 7
          %v662 = vsub.s32 0, %v661
          %v663 = vrot.slane %v658, %v662
          %v665 = vmul.f32 %v657, %v663
          %vm666 = vcmask 1043456
          %v667 = vsel %vm666, %v665, 0.0
          %668 = vadd.xlane.f32.xlu0 %v667
          %v669 = vpop.xlane.xlu0 %668
          %v670 = vsel %vm666, %v669, -inf
          %v671 = vrot.slane %v670, 4
          %v672 = vmax.f32 %v670, %v671
          %v673 = vrot.slane %v672, 2
          %v674 = vmax.f32 %v672, %v673
          %v675 = vrot.slane %v674, 1
          %v676 = vmax.f32 %v674, %v675
          %s677 = vtos %v676
          %v678 = vstv %s677
          %v679 = vsub.f32 %v669, %v678
          %v680 = vmul.f32 %v679, 1.442695
          %v681 = vpow.pop %v680
          %vm682 = vcmask 3072
          %v683 = vsel %vm682, %v681, 0.0
          %684 = vadd.xlane.f32.xlu0 %v683
          %v685 = vpop.xlane.xlu0 %684
          %v686 = vrot.slane %v685, 4
          %v687 = vadd.f32 %v685, %v686
          %v688 = vrot.slane %v687, 2
          %v689 = vadd.f32 %v687, %v688
          %v690 = vrot.slane %v689, 1
          %v691 = vadd.f32 %v689, %v690
          %s692 = vtos %v691
          %v693 = vstv %s692
          %v694 = vrcp.pop %v693
          %v695 = vmul.f32 %v681, %v694
          %696 = vst.msk [vmem:[%s5] sm:$0xf] %vm682, %v695
        $region60: #{tpu_custom_call.1} parent=39 // pred_fallthru
          _
        // Predicated region
        $region61: #{tpu_custom_call.1} parent=39 // pred_check
          %p697 = pneg %p143
        $region62: #{tpu_custom_call.1} parent=39 // pred_check_branch
          %699 = sbr.rel (%p697) target = $region64
        $region63: #{tpu_custom_call.1} parent=39 // pred_region
          _
        $region64: #{tpu_custom_call.1} parent=39 // pred_fallthru
          _
        // Predicated region
        $region65: #{tpu_custom_call.1} parent=39 // pred_check
          %p700 = pneg %p143
        $region66: #{tpu_custom_call.1} parent=39 // pred_check_branch
          %702 = sbr.rel (%p700) target = $region68
        $region67: #{tpu_custom_call.1} parent=39 // pred_region
          _
        $region68: #{tpu_custom_call.1} parent=39 // pred_fallthru
          _
      $region40: #{tpu_custom_call.1} parent=5 // pred_fallthru
        _
      %p703 = scmp.le.s32.totalorder 2, %s15
      // Predicated region
      $region69: #{tpu_custom_call.1} parent=5 // pred_check
        %p704 = pneg %p703
      $region70: #{tpu_custom_call.1} parent=5 // pred_check_branch
        %706 = sbr.rel (%p704) target = $region72
      $region71: #{tpu_custom_call.1} parent=5 // pred_region
        %s707 = ssub.s32 %s15, 2
      $region72: #{tpu_custom_call.1} parent=5 // pred_fallthru
        _
    $region6: #{tpu_custom_call.1} parent=1 // loop_footer
      %s19 = sadd.s32 1, %s15
    $region7: #{tpu_custom_call.1} parent=1 // loop_footer_branch
      %14 = sbr.rel target = $region3
    $region8: #{tpu_custom_call.1} parent=1 // loop_exit
      _
    %708 = vsyncpa [#allocation4], 1
    %s709 = scalar_lea.sflag [#allocation4], 1
    %710 = vsyncpa %s709, 1
    %711 = vsyncpa [#allocation6], 1

</llo_original>
